<compile_context>
chip_gen: v5e
topology: v5e:2x2
jax: 0.10.0
libtpu: 0.0.40
codegen_flags: <defaults>
</compile_context>

<pallas_src>
import math
import numpy as np
import jax
import jax.numpy as jnp
from jax.experimental import pallas as pl
from jax.experimental.pallas import tpu as pltpu

_MEAN = np.array([0.48145466, 0.4578275, 0.40821073], dtype=np.float32)
_STD = np.array([0.26862954, 0.26130258, 0.27577711], dtype=np.float32)


def _cubic_weight(x, a=-0.75):
    x = abs(float(x))
    if x <= 1.0:
        return (a + 2.0) * x**3 - (a + 3.0) * x**2 + 1.0
    if x < 2.0:
        return a * x**3 - 5.0 * a * x**2 + 8.0 * a * x - 4.0 * a
    return 0.0


def _bicubic_matrix(in_size, out_size):
    """Dense (out_size, in_size) bicubic interpolation matrix.

    Matches F.interpolate(mode='bicubic', align_corners=False), a=-0.75,
    edge-replicate boundary handling.
    # TODO(synk): torchvision Resize defaults to antialias=True for tensor
    # inputs when downscaling; this is the non-antialiased bicubic kernel.
    """
    mat = np.zeros((out_size, in_size), dtype=np.float32)
    scale = in_size / out_size
    for j in range(out_size):
        src = (j + 0.5) * scale - 0.5
        f = math.floor(src)
        frac = src - f
        for k in range(-1, 3):
            idx = min(max(f + k, 0), in_size - 1)
            mat[j, idx] += _cubic_weight(frac - k)
    return mat


def _resize_crop_matrices(H, W, image_size):
    # torchvision Resize([S]): smaller edge -> S, aspect preserved (int() rule).
    if H <= W:
        new_h, new_w = image_size, int(image_size * W / H)
    else:
        new_h, new_w = int(image_size * H / W), image_size
    ah = _bicubic_matrix(H, new_h)            # (new_h, H)
    aw = _bicubic_matrix(W, new_w)            # (new_w, W)
    # CenterCrop folded into the interpolation matrices.
    top = int(round((new_h - image_size) / 2.0))
    left = int(round((new_w - image_size) / 2.0))
    ah_c = ah[top:top + image_size]           # (S, H)
    aw_c = aw[left:left + image_size]         # (S, W)
    return ah_c, aw_c


def _pick_group_size(num_planes, H, W, S, budget_bytes=8 * 2**20):
    """Planes per grid step: amortize ~0.35us/step overhead within a VMEM budget."""
    # Rough per-plane footprint: double-buffered u8 input + double-buffered f32
    # output + in-kernel intermediates.
    per_plane = 2 * H * W + 8 * S * S + 6 * H * S + 6 * S * W
    max_g = max(1, budget_bytes // per_plane)
    # Keep >=2 grid steps so DMA pipelining / dual-TC sharding (v7x) can engage.
    max_g = min(max_g, max(1, num_planes // 2))
    g = 1
    for d in range(1, num_planes + 1):
        if num_planes % d == 0 and d <= max_g:
            g = d
    return g


def _transform_kernel(scale_ref, shift_ref, x_ref, ah_ref, awt_ref, o_ref):
    # scale_ref/shift_ref: SMEM scalar-prefetch arrays, shape (B*C,) f32
    # x_ref : (1, G*H, W) uint8      ah_ref : (S, H) bf16
    # awt_ref: (W, S) bf16           o_ref  : (G, S, S) f32
    i = pl.program_id(0)
    G, S = o_ref.shape[0], o_ref.shape[1]
    H = ah_ref.shape[1]
    W = awt_ref.shape[0]

    # uint8 -> bf16 is exact for 0..255; casting in-kernel keeps HBM traffic at
    # 1 byte/pixel instead of 4.
    xb = x_ref[0].astype(jnp.float32).astype(jnp.bfloat16)          # (G*H, W)
    ah = ah_ref[...]                                                 # (S, H)
    awt = awt_ref[...]                                               # (W, S)

    if W >= H:
        # Contract the wider axis (W) first, flattened over all G planes:
        # one big (G*H, W) @ (W, S) matmul keeps the MXU M-dimension full.
        t = jnp.dot(xb, awt, preferred_element_type=jnp.float32)     # (G*H, S)
        tb = t.astype(jnp.bfloat16)
        for g in range(G):
            y = jnp.dot(ah, tb[g * H:(g + 1) * H, :],
                        preferred_element_type=jnp.float32)          # (S, S)
            p = i * G + g
            o_ref[g] = y * scale_ref[p] + shift_ref[p]
    else:
        # Portrait input: contracting H first does fewer FLOPs.
        for g in range(G):
            xg = xb[g * H:(g + 1) * H, :]                            # (H, W)
            t = jnp.dot(ah, xg, preferred_element_type=jnp.float32)  # (S, W)
            y = jnp.dot(t.astype(jnp.bfloat16), awt,
                        preferred_element_type=jnp.float32)          # (S, S)
            p = i * G + g
            o_ref[g] = y * scale_ref[p] + shift_ref[p]


def clip_transform(x_u8, image_size):
    B, C, H, W = x_u8.shape
    assert C == 3, "Normalize constants are 3-channel (RGB)"
    S = image_size
    BC = B * C
    ah_np, aw_np = _resize_crop_matrices(H, W, S)
    # bf16 operands -> full-rate MXU path on v5e/v6e/v7x; accumulation stays f32.
    ah = jnp.asarray(ah_np, dtype=jnp.bfloat16)      # (S, H)
    awt = jnp.asarray(aw_np.T, dtype=jnp.bfloat16)   # (W, S)

    G = _pick_group_size(BC, H, W, S)
    num_groups = BC // G
    # Free contiguous reshape: groups of G planes flattened to (G*H, W) so the
    # kernel's W-contraction is a single matmul with no in-kernel reshape.
    x_g = x_u8.reshape(num_groups, G * H, W)

    # ConvertImageDtype (1/255) + Normalize folded into y * scale + shift.
    scale = jnp.tile(jnp.asarray(1.0 / (255.0 * _STD), dtype=jnp.float32), B)  # (B*C,)
    shift = jnp.tile(jnp.asarray(-_MEAN / _STD, dtype=jnp.float32), B)         # (B*C,)

    # Raise scoped VMEM only if the estimated pipeline footprint needs it
    # (v5e default scoped = 16 MiB; v7x physical = 64 MiB, so cap the request).
    # TODO(synk): for very large sources, also tile the contraction dim with an
    # f32 accumulator instead of loading the whole (G*H, W) slab.
    est = 2 * G * H * W + 8 * G * S * S + 4 * S * H + 4 * W * S + 6 * G * H * S
    vmem_limit = int(min(48 * 2**20, 2 * est)) if est > 12 * 2**20 else None

    # Note: output last dim S (e.g. 224) is not lane-dense (multiple of 128);
    # padding awt to 256 cols + wrapper slice was considered but the extra HBM
    # slice copy offsets most of the store-side win, so it is skipped.
    out = pl.pallas_call(
        _transform_kernel,
        out_shape=jax.ShapeDtypeStruct((BC, S, S), jnp.float32),
        grid_spec=pltpu.PrefetchScalarGridSpec(
            num_scalar_prefetch=2,
            grid=(num_groups,),
            in_specs=[
                pl.BlockSpec((1, G * H, W), lambda i, sc, sh: (i, 0, 0)),
                pl.BlockSpec((S, H), lambda i, sc, sh: (0, 0)),
                pl.BlockSpec((W, S), lambda i, sc, sh: (0, 0)),
            ],
            out_specs=pl.BlockSpec((G, S, S), lambda i, sc, sh: (i, 0, 0)),
        ),
        compiler_params=pltpu.CompilerParams(
            dimension_semantics=("parallel",),
            vmem_limit_bytes=vmem_limit),
    )(scale, shift, x_g, ah, awt)
    return out.reshape(B, C, S, S)


def _bf16_round(a):
    return np.asarray(jnp.asarray(a, dtype=jnp.bfloat16).astype(jnp.float32))


def _reference(x_u8, image_size):
    # f32 reference using the same bf16-rounded resize matrices as the kernel
    # (isolates the intentional bf16-operand approximation).
    B, C, H, W = x_u8.shape
    ah_c, aw_c = _resize_crop_matrices(H, W, image_size)
    ah_b = _bf16_round(ah_c)
    aw_b = _bf16_round(aw_c)
    xf = np.asarray(x_u8).astype(np.float32)          # 0..255; 1/255 folded into scale
    y = np.einsum("oh,bchw,pw->bcop", ah_b, xf, aw_b)
    scale = (1.0 / (255.0 * _STD))[None, :, None, None]
    shift = (-_MEAN / _STD)[None, :, None, None]
    return y * scale + shift


if __name__ == "__main__":
    key = jax.random.PRNGKey(0)
    B, C, H, W, image_size = 2, 3, 20, 28, 16
    x = jax.random.randint(key, (B, C, H, W), 0, 256, dtype=jnp.int32).astype(jnp.uint8)

    out = clip_transform(x, image_size)
    jax.block_until_ready(out)

    ref = _reference(x, image_size)
    assert out.shape == (B, C, image_size, image_size), out.shape
    # bf16 MXU operands + in-kernel bf16 intermediate => ~1e-2 deviation vs f32 math.
    np.testing.assert_allclose(np.asarray(out), ref, rtol=3e-2, atol=3e-2)
    print("KERNEL_OK")
</pallas_src>

<mosaic_0001>
module attributes {stable_mosaic.version = 11 : i64} {
  func.func @_transform_kernel(%arg0: i32, %arg1: memref<6xf32, #tpu.memory_space<smem>>, %arg2: memref<6xf32, #tpu.memory_space<smem>>, %arg3: memref<1x60x28xi8, #tpu.memory_space<vmem>>, %arg4: memref<16x20xbf16, #tpu.memory_space<vmem>>, %arg5: memref<28x16xbf16, #tpu.memory_space<vmem>>, %arg6: memref<3x16x16xf32, #tpu.memory_space<vmem>>) attributes {dimension_semantics = [#tpu.dimension_semantics<parallel>], iteration_bounds = array<i64: 2>, scalar_prefetch = 2 : i64, scratch_operands = 0 : i64, tpu.core_type = #tpu.core_type<tc>, window_params = [{transform_indices = @transform_0, window_bounds = array<i64: 1, 60, 28>}, {pipeline_mode = #tpu.pipeline_mode<synchronous>, transform_indices = @transform_1, window_bounds = array<i64: 16, 20>}, {pipeline_mode = #tpu.pipeline_mode<synchronous>, transform_indices = @transform_2, window_bounds = array<i64: 28, 16>}, {transform_indices = @transform_3, window_bounds = array<i64: 3, 16, 16>}]} {
    %c0 = arith.constant 0 : index
    %c0_0 = arith.constant 0 : index
    %c0_1 = arith.constant 0 : index
    %0 = vector.load %arg3[%c0, %c0_0, %c0_1] : memref<1x60x28xi8, #tpu.memory_space<vmem>>, vector<1x60x28xi8>
    %1 = vector.shape_cast %0 : vector<1x60x28xi8> to vector<60x28xi8>
    %2 = arith.uitofp %1 : vector<60x28xi8> to vector<60x28xf32>
    %3 = arith.truncf %2 : vector<60x28xf32> to vector<60x28xbf16>
    %c0_2 = arith.constant 0 : index
    %c0_3 = arith.constant 0 : index
    %4 = vector.load %arg4[%c0_2, %c0_3] : memref<16x20xbf16, #tpu.memory_space<vmem>>, vector<16x20xbf16>
    %c0_4 = arith.constant 0 : index
    %c0_5 = arith.constant 0 : index
    %5 = vector.load %arg5[%c0_4, %c0_5] : memref<28x16xbf16, #tpu.memory_space<vmem>>, vector<28x16xbf16>
    %cst = arith.constant dense<0.000000e+00> : vector<60x16xf32>
    %6 = tpu.matmul %3, %5, %cst {dimension_numbers = #tpu.dot_dimension_numbers<[1], [0], [0], [1], [0, 0, 1, 1], [], []>} : vector<60x28xbf16>, vector<28x16xbf16>, vector<60x16xf32> -> vector<60x16xf32>
    %7 = arith.truncf %6 : vector<60x16xf32> to vector<60x16xbf16>
    %8 = vector.extract_strided_slice %7 {offsets = [0, 0], sizes = [20, 16], strides = [1, 1]} : vector<60x16xbf16> to vector<20x16xbf16>
    %cst_6 = arith.constant dense<0.000000e+00> : vector<16x16xf32>
    %9 = tpu.matmul %4, %8, %cst_6 {dimension_numbers = #tpu.dot_dimension_numbers<[1], [0], [0], [1], [0, 0, 1, 1], [], []>} : vector<16x20xbf16>, vector<20x16xbf16>, vector<16x16xf32> -> vector<16x16xf32>
    %c3_i32 = arith.constant 3 : i32
    %10 = arith.muli %arg0, %c3_i32 : i32
    %c0_i32 = arith.constant 0 : i32
    %11 = arith.addi %10, %c0_i32 : i32
    %12 = arith.index_cast %11 : i32 to index
    %13 = memref.load %arg1[%12] : memref<6xf32, #tpu.memory_space<smem>>
    %14 = vector.broadcast %13 : f32 to vector<16x16xf32>
    %15 = arith.mulf %9, %14 : vector<16x16xf32>
    %16 = arith.index_cast %11 : i32 to index
    %17 = memref.load %arg2[%16] : memref<6xf32, #tpu.memory_space<smem>>
    %18 = vector.broadcast %17 : f32 to vector<16x16xf32>
    %19 = arith.addf %15, %18 : vector<16x16xf32>
    %c0_7 = arith.constant 0 : index
    %c0_8 = arith.constant 0 : index
    %c0_9 = arith.constant 0 : index
    %20 = vector.load %arg6[%c0_7, %c0_8, %c0_9] : memref<3x16x16xf32, #tpu.memory_space<vmem>>, vector<1x16x16xf32>
    %21 = vector.shape_cast %20 : vector<1x16x16xf32> to vector<16x16xf32>
    %22 = vector.shape_cast %19 : vector<16x16xf32> to vector<1x16x16xf32>
    tpu.vector_store %arg6[%c0_7, %c0_8, %c0_9], %22 {strides = array<i32>} : memref<3x16x16xf32, #tpu.memory_space<vmem>>, vector<1x16x16xf32>,
    %23 = vector.extract_strided_slice %7 {offsets = [20, 0], sizes = [20, 16], strides = [1, 1]} : vector<60x16xbf16> to vector<20x16xbf16>
    %cst_10 = arith.constant dense<0.000000e+00> : vector<16x16xf32>
    %24 = tpu.matmul %4, %23, %cst_10 {dimension_numbers = #tpu.dot_dimension_numbers<[1], [0], [0], [1], [0, 0, 1, 1], [], []>} : vector<16x20xbf16>, vector<20x16xbf16>, vector<16x16xf32> -> vector<16x16xf32>
    %c3_i32_11 = arith.constant 3 : i32
    %25 = arith.muli %arg0, %c3_i32_11 : i32
    %c1_i32 = arith.constant 1 : i32
    %26 = arith.addi %25, %c1_i32 : i32
    %27 = arith.index_cast %26 : i32 to index
    %28 = memref.load %arg1[%27] : memref<6xf32, #tpu.memory_space<smem>>
    %29 = vector.broadcast %28 : f32 to vector<16x16xf32>
    %30 = arith.mulf %24, %29 : vector<16x16xf32>
    %31 = arith.index_cast %26 : i32 to index
    %32 = memref.load %arg2[%31] : memref<6xf32, #tpu.memory_space<smem>>
    %33 = vector.broadcast %32 : f32 to vector<16x16xf32>
    %34 = arith.addf %30, %33 : vector<16x16xf32>
    %c1 = arith.constant 1 : index
    %c0_12 = arith.constant 0 : index
    %c0_13 = arith.constant 0 : index
    %35 = vector.load %arg6[%c1, %c0_12, %c0_13] : memref<3x16x16xf32, #tpu.memory_space<vmem>>, vector<1x16x16xf32>
    %36 = vector.shape_cast %35 : vector<1x16x16xf32> to vector<16x16xf32>
    %37 = vector.shape_cast %34 : vector<16x16xf32> to vector<1x16x16xf32>
    tpu.vector_store %arg6[%c1, %c0_12, %c0_13], %37 {strides = array<i32>} : memref<3x16x16xf32, #tpu.memory_space<vmem>>, vector<1x16x16xf32>,
    %38 = vector.extract_strided_slice %7 {offsets = [40, 0], sizes = [20, 16], strides = [1, 1]} : vector<60x16xbf16> to vector<20x16xbf16>
    %cst_14 = arith.constant dense<0.000000e+00> : vector<16x16xf32>
    %39 = tpu.matmul %4, %38, %cst_14 {dimension_numbers = #tpu.dot_dimension_numbers<[1], [0], [0], [1], [0, 0, 1, 1], [], []>} : vector<16x20xbf16>, vector<20x16xbf16>, vector<16x16xf32> -> vector<16x16xf32>
    %c3_i32_15 = arith.constant 3 : i32
    %40 = arith.muli %arg0, %c3_i32_15 : i32
    %c2_i32 = arith.constant 2 : i32
    %41 = arith.addi %40, %c2_i32 : i32
    %42 = arith.index_cast %41 : i32 to index
    %43 = memref.load %arg1[%42] : memref<6xf32, #tpu.memory_space<smem>>
    %44 = vector.broadcast %43 : f32 to vector<16x16xf32>
    %45 = arith.mulf %39, %44 : vector<16x16xf32>
    %46 = arith.index_cast %41 : i32 to index
    %47 = memref.load %arg2[%46] : memref<6xf32, #tpu.memory_space<smem>>
    %48 = vector.broadcast %47 : f32 to vector<16x16xf32>
    %49 = arith.addf %45, %48 : vector<16x16xf32>
    %c2 = arith.constant 2 : index
    %c0_16 = arith.constant 0 : index
    %c0_17 = arith.constant 0 : index
    %50 = vector.load %arg6[%c2, %c0_16, %c0_17] : memref<3x16x16xf32, #tpu.memory_space<vmem>>, vector<1x16x16xf32>
    %51 = vector.shape_cast %50 : vector<1x16x16xf32> to vector<16x16xf32>
    %52 = vector.shape_cast %49 : vector<16x16xf32> to vector<1x16x16xf32>
    tpu.vector_store %arg6[%c2, %c0_16, %c0_17], %52 {strides = array<i32>} : memref<3x16x16xf32, #tpu.memory_space<vmem>>, vector<1x16x16xf32>,
    return
  }
  func.func @transform_0(%arg0: i32, %arg1: memref<6xf32, #tpu.memory_space<smem>>, %arg2: memref<6xf32, #tpu.memory_space<smem>>) -> (i32, i32, i32) {
    %c0_i32 = arith.constant 0 : i32
    %c0_i32_0 = arith.constant 0 : i32
    %c0_i32_1 = arith.constant 0 : i32
    return %arg0, %c0_i32, %c0_i32_0 : i32, i32, i32
  }
  func.func @transform_1(%arg0: i32, %arg1: memref<6xf32, #tpu.memory_space<smem>>, %arg2: memref<6xf32, #tpu.memory_space<smem>>) -> (i32, i32) {
    %c0_i32 = arith.constant 0 : i32
    %c0_i32_0 = arith.constant 0 : i32
    %c0_i32_1 = arith.constant 0 : i32
    return %c0_i32, %c0_i32_0 : i32, i32
  }
  func.func @transform_2(%arg0: i32, %arg1: memref<6xf32, #tpu.memory_space<smem>>, %arg2: memref<6xf32, #tpu.memory_space<smem>>) -> (i32, i32) {
    %c0_i32 = arith.constant 0 : i32
    %c0_i32_0 = arith.constant 0 : i32
    %c0_i32_1 = arith.constant 0 : i32
    return %c0_i32, %c0_i32_0 : i32, i32
  }
  func.func @transform_3(%arg0: i32, %arg1: memref<6xf32, #tpu.memory_space<smem>>, %arg2: memref<6xf32, #tpu.memory_space<smem>>) -> (i32, i32, i32) {
    %c0_i32 = arith.constant 0 : i32
    %c0_i32_0 = arith.constant 0 : i32
    %c0_i32_1 = arith.constant 0 : i32
    return %arg0, %c0_i32, %c0_i32_0 : i32, i32, i32
  }
}

</mosaic_0001>

<llo_original>
// kernel: tpu_custom_call.1
$region0: #{tpu_custom_call.1}
  #allocation0 [shape = 'u32[]', space=smem, size = 0x4, offset = 0x4, fixed_abs, tag = 'smem constant byte address 0x4 - core index']
  #allocation1 [shape = 'u32[72,128]{1,0:T(1,128)}', space=vmem, size = 0x9000, scoped, tag = 'internal scratch']
  #allocation2 [shape = 's32[1]{0}', space=sflag, size = 0x4, scoped, tag = 'scoped memory for tpu_custom_call.1']
  #allocation3 [shape = 'u8[512]{0}', space=smem, size = 0x200, scoped, tag = 'prefetched SMEM operand 0']
  #allocation4 [shape = 'u8[512]{0}', space=smem, size = 0x200, scoped, tag = 'prefetched SMEM operand 1']
  %s0 = inlined_call_operand.vmem [shape: f32[6], index: 0, kind: input, shape index: {}]
  %s1 = inlined_call_operand.vmem [shape: f32[6], index: 1, kind: input, shape index: {}]
  %s2 = inlined_call_operand.vmem [shape: u8[2,60,28], index: 2, kind: input, shape index: {}]
  %s3 = inlined_call_operand.vmem [shape: bf16[16,20], index: 3, kind: input, shape index: {}]
  %s4 = inlined_call_operand.vmem [shape: bf16[28,16], index: 4, kind: input, shape index: {}]
  %s5 = inlined_call_operand.hbm [shape: f32[6,16,16], index: 5, kind: output, shape index: {}]
  %s6 = sld [smem:[#allocation0]]
  $region45: #{tpu_custom_call.1} parent=0
    _
  %s8 = ssub.s32 1, %s6
  %s9 = scalar_select 0, %s8, %s6
  %s11 = sshll.u32 %s0, 4
  %s12 = int_to_ptr.vmem [resolvable:$true] %s11
  %14 = dma.vmem_to_smem %s12, 16, [#allocation3], [#allocation2]
  %s16 = sshll.u32 %s1, 4
  %s17 = int_to_ptr.vmem [resolvable:$true] %s16
  %19 = dma.vmem_to_smem %s17, 16, [#allocation4], [#allocation2]
  %21 = dma.done [#allocation2], 32
  %22 = sfence
  $region1: #{tpu_custom_call.1} parent=0
    #allocation5 [shape = 'u8[49152]{0}', space=vmem, size = 0xc000, scoped, tag = 'output window, operand 0']
    #allocation6 [shape = 's32[2]{0}', space=sflag, size = 0x8, scoped, tag = 'scoped memory for tpu_custom_call.1']
    %23 = vsyncpa [#allocation6], 0
    %s24 = scalar_lea.sflag [#allocation6], 1
    %25 = vsyncpa %s24, 0
    loop: start=0, step=1, limit=4
    $region2: #{tpu_custom_call.1} parent=1 // loop_pre_header
      _
    $region3: #{tpu_custom_call.1} parent=1 // loop_header
      %s27 = sphi 0, %s31
      %p28 = scmp.ge.s32.totalorder %s27, 4
      %s37 = sphi 0, %s39
      %s40 = sphi 0, %s37
      %s41 = sphi 0, %s40
      %s57 = sphi 0, %s41
      %s61 = sphi 0, %s61
      %s63 = sphi 0, %s61
      %s64 = sphi 0, %s63
      %s78 = sphi 0, %s64
      %s82 = sphi 0, %s82
      %s84 = sphi 0, %s82
      %s85 = sphi 0, %s84
      %s99 = sphi 0, %s85
      %s105 = sphi 0, %s107
      %s108 = sphi 0, %s105
      %s109 = sphi 0, %s108
      %s125 = sphi 0, %s109
    $region4: #{tpu_custom_call.1} parent=1 // loop_header_branch
      %30 = sbr.rel (%p28) target = $region8
    $region5: #{tpu_custom_call.1} parent=1 // loop_body
      %s32 = ssub.s32 %s27, 1
      %s33 = ssub.s32 %s27, 2
      %s34 = sadd.s32 %s27, 1
      %s35 = ssub.s32 %s27, %s34
      %p36 = scmp.eq.s32.totalorder %s35, 0
      %s38 = sadd.s32 %s37, 1
      %s39 = scalar_select %p36, %s37, %s38
      %p42 = pneg %p36
      %p43 = scmp.eq.s32.totalorder %s27, 1
      %p44 = por %p42, %p43
      %p45 = scmp.ne.s32.totalorder %s37, %s40
      %p46 = scmp.eq.s32.totalorder %s27, 0
      %p47 = por %p45, %p46
      %p48 = scmp.ne.s32.totalorder %s37, %s40
      %p49 = scmp.eq.s32.totalorder %s32, 1
      %p50 = por %p48, %p49
      %p51 = scmp.ne.s32.totalorder %s40, %s41
      %p52 = scmp.eq.s32.totalorder %s32, 0
      %p53 = por %p51, %p52
      %p54 = scmp.ne.s32.totalorder %s40, %s41
      %p55 = scmp.eq.s32.totalorder %s33, 1
      %p56 = por %p54, %p55
      %p58 = scmp.ne.s32.totalorder %s41, %s57
      %p59 = scmp.eq.s32.totalorder %s33, 0
      %p60 = por %p58, %p59
      %s62 = sadd.s32 %s61, 1
      %p65 = scmp.eq.s32.totalorder %s27, 1
      %p66 = scmp.ne.s32.totalorder %s61, %s63
      %p67 = scmp.eq.s32.totalorder %s27, 0
      %p68 = por %p66, %p67
      %p69 = scmp.ne.s32.totalorder %s61, %s63
      %p70 = scmp.eq.s32.totalorder %s32, 1
      %p71 = por %p69, %p70
      %p72 = scmp.ne.s32.totalorder %s63, %s64
      %p73 = scmp.eq.s32.totalorder %s32, 0
      %p74 = por %p72, %p73
      %p75 = scmp.ne.s32.totalorder %s63, %s64
      %p76 = scmp.eq.s32.totalorder %s33, 1
      %p77 = por %p75, %p76
      %p79 = scmp.ne.s32.totalorder %s64, %s78
      %p80 = scmp.eq.s32.totalorder %s33, 0
      %p81 = por %p79, %p80
      %s83 = sadd.s32 %s82, 1
      %p86 = scmp.eq.s32.totalorder %s27, 1
      %p87 = scmp.ne.s32.totalorder %s82, %s84
      %p88 = scmp.eq.s32.totalorder %s27, 0
      %p89 = por %p87, %p88
      %p90 = scmp.ne.s32.totalorder %s82, %s84
      %p91 = scmp.eq.s32.totalorder %s32, 1
      %p92 = por %p90, %p91
      %p93 = scmp.ne.s32.totalorder %s84, %s85
      %p94 = scmp.eq.s32.totalorder %s32, 0
      %p95 = por %p93, %p94
      %p96 = scmp.ne.s32.totalorder %s84, %s85
      %p97 = scmp.eq.s32.totalorder %s33, 1
      %p98 = por %p96, %p97
      %p100 = scmp.ne.s32.totalorder %s85, %s99
      %p101 = scmp.eq.s32.totalorder %s33, 0
      %p102 = por %p100, %p101
      %s103 = ssub.s32 %s27, %s34
      %p104 = scmp.eq.s32.totalorder %s103, 0
      %s106 = sadd.s32 %s105, 1
      %s107 = scalar_select %p104, %s105, %s106
      %p110 = pneg %p104
      %p111 = scmp.eq.s32.totalorder %s27, 1
      %p112 = por %p110, %p111
      %p113 = scmp.ne.s32.totalorder %s105, %s108
      %p114 = scmp.eq.s32.totalorder %s27, 0
      %p115 = por %p113, %p114
      %p116 = scmp.ne.s32.totalorder %s105, %s108
      %p117 = scmp.eq.s32.totalorder %s32, 1
      %p118 = por %p116, %p117
      %p119 = scmp.ne.s32.totalorder %s108, %s109
      %p120 = scmp.eq.s32.totalorder %s32, 0
      %p121 = por %p119, %p120
      %p122 = scmp.ne.s32.totalorder %s108, %s109
      %p123 = scmp.eq.s32.totalorder %s33, 1
      %p124 = por %p122, %p123
      %p126 = scmp.ne.s32.totalorder %s109, %s125
      %p127 = scmp.eq.s32.totalorder %s33, 0
      %p128 = por %p126, %p127
      %p129 = scmp.le.s32.totalorder 1, %s27
      %p130 = scmp.lt.s32.totalorder %s27, 3
      %p131 = pnand %p129, %p130
      %p132 = pneg %p131
      // Predicated region
      $region9: #{tpu_custom_call.1} parent=5 // pred_check
        _
      $region10: #{tpu_custom_call.1} parent=5 // pred_check_branch
        %134 = sbr.rel (%p131) target = $region12
      $region11: #{tpu_custom_call.1} parent=5 // pred_region
        %s135 = ssub.s32 %s27, 1
        // Predicated region
        $region13: #{tpu_custom_call.1} parent=11 // pred_check
          %p136 = pneg %p74
        $region14: #{tpu_custom_call.1} parent=11 // pred_check_branch
          %138 = sbr.rel (%p136) target = $region16
        $region15: #{tpu_custom_call.1} parent=11 // pred_region
          _
        $region16: #{tpu_custom_call.1} parent=11 // pred_fallthru
          _
        // Predicated region
        $region17: #{tpu_custom_call.1} parent=11 // pred_check
          %p139 = pneg %p95
        $region18: #{tpu_custom_call.1} parent=11 // pred_check_branch
          %141 = sbr.rel (%p139) target = $region20
        $region19: #{tpu_custom_call.1} parent=11 // pred_region
          _
        $region20: #{tpu_custom_call.1} parent=11 // pred_fallthru
          _
      $region12: #{tpu_custom_call.1} parent=5 // pred_fallthru
        _
      %p142 = scmp.lt.s32.totalorder %s27, 2
      // Predicated region
      $region21: #{tpu_custom_call.1} parent=5 // pred_check
        %p143 = pneg %p142
      $region22: #{tpu_custom_call.1} parent=5 // pred_check_branch
        %145 = sbr.rel (%p143) target = $region24
      $region23: #{tpu_custom_call.1} parent=5 // pred_region
        // Predicated region
        $region25: #{tpu_custom_call.1} parent=23 // pred_check
          %p146 = pneg %p47
        $region26: #{tpu_custom_call.1} parent=23 // pred_check_branch
          %148 = sbr.rel (%p146) target = $region28
        $region27: #{tpu_custom_call.1} parent=23 // pred_region
          %p149 = scmp.lt.s32.totalorder %s27, 1
          %s150 = scalar_select %p149, %s27, 1
          %s151 = smul.addr %s150, 8
          %s152 = smul.addr %s151, 2
          %s153 = scalar_lea.vmem %s2, %s152
        $region28: #{tpu_custom_call.1} parent=23 // pred_fallthru
          _
      $region24: #{tpu_custom_call.1} parent=5 // pred_fallthru
        _
      %p154 = scmp.le.s32.totalorder 1, %s27
      %p155 = scmp.lt.s32.totalorder %s27, 3
      %p156 = pnand %p154, %p155
      %p157 = pneg %p156
      // Predicated region
      $region29: #{tpu_custom_call.1} parent=5 // pred_check
        _
      $region30: #{tpu_custom_call.1} parent=5 // pred_check_branch
        %159 = sbr.rel (%p156) target = $region32
      $region31: #{tpu_custom_call.1} parent=5 // pred_region
        %s160 = ssub.s32 %s27, 1
        %p161 = scmp.lt.s32.totalorder %s32, 1
        %s162 = scalar_select %p161, %s32, 1
        %s163 = smul.addr %s162, 8
        %s164 = smul.addr %s163, 2
        %s165 = scalar_lea.vmem %s2, %s164
        %p166 = pneg %p53
        %p167 = pneg %p50
        %p168 = pneg %p74
        %p169 = pneg %p71
        %p170 = pneg %p95
        %p171 = pneg %p92
        %p172 = pneg %p121
        %p173 = pneg %p118
        %s174 = sand.u32 %s108, 1
        %s175 = scalar_lea.sflag [#allocation6], %s174
        %s176 = sand.u32 %s108, 1
        %s177 = smul.addr %s176, 48
        %s178 = scalar_lea.vmem [#allocation5], %s177
        %p179 = scmp.lt.s32.totalorder %s32, 1
        %s180 = scalar_select %p179, %s32, 1
        %s181 = smul.addr %s180, 8
        %s182 = smul.addr %s181, 2
        %s183 = scalar_lea.vmem %s2, %s182
        %s184 = smul.u32 3, %s32
        %v186 = vld [vmem:[%s183] sm:$0x3]
        %v187 = vld [vmem:[%s183 + $0x2] sm:$0x3]
        %v188 = vld [vmem:[%s183 + $0x4] sm:$0x3]
        %v189 = vld [vmem:[%s183 + $0x6] sm:$0x3]
        %v190 = vld [vmem:[%s183 + $0x8] sm:$0x3]
        %v191 = vld [vmem:[%s183 + $0xa] sm:$0x3]
        %v192 = vld [vmem:[%s183 + $0xc] sm:$0x3]
        %v193 = vld [vmem:[%s183 + $0xe] sm:$0x1]
        %v194 = vunpack.c.0.s8 %v186
        %v195 = vunpack.c.0.s8 %v187
        %v196 = vunpack.c.0.s8 %v188
        %v197 = vunpack.c.0.s8 %v189
        %v198 = vunpack.c.0.s8 %v190
        %v199 = vunpack.c.0.s8 %v191
        %v200 = vunpack.c.0.s8 %v192
        %v201 = vunpack.c.0.s8 %v193
        %v202 = vand.u32 %v194, 255
        %v203 = vand.u32 %v195, 255
        %v204 = vand.u32 %v196, 255
        %v205 = vand.u32 %v197, 255
        %v206 = vand.u32 %v198, 255
        %v207 = vand.u32 %v199, 255
        %v208 = vand.u32 %v200, 255
        %v209 = vand.u32 %v201, 255
        %v210 = vcvt.s32.f32 %v202
        %v211 = vcvt.s32.f32 %v203
        %v212 = vcvt.s32.f32 %v204
        %v213 = vcvt.s32.f32 %v205
        %v214 = vcvt.s32.f32 %v206
        %v215 = vcvt.s32.f32 %v207
        %v216 = vcvt.s32.f32 %v208
        %v217 = vcvt.s32.f32 %v209
        %v218 = vpack.c.bf16 %v211, %v210
        %v219 = vpack.c.bf16 %v213, %v212
        %v220 = vpack.c.bf16 %v215, %v214
        %v221 = vpack.c.bf16 %v217, %v216
        %v222 = vld [vmem:[%s3] sm:$0xf]
        %v223 = vld [vmem:[%s3 + $0x4] sm:$0xf]
        %v224 = vld [vmem:[%s4] sm:$0xf]
        %v225 = vld [vmem:[%s4 + $0x4] sm:$0xf]
        %v226 = vld [vmem:[%s4 + $0x8] sm:$0xf]
        %v227 = vld [vmem:[%s4 + $0xc] sm:$0x3]
        %v232 = vunpack.c.l.b16 %v224
        %v233 = vunpack.c.l.b16 %v225
        %v234 = vunpack.c.l.b16 %v226
        %v235 = vunpack.c.l.b16 %v227
        %v236 = vpack.c.b16 %v233, %v232
        %v237 = vpack.c.b16 %v235, %v234
        %vm239 = vcmask 228352
        %v241 = vsel %vm239, %v218, 0
        %v244 = vsel %vm239, %v219, 0
        %v247 = vsel %vm239, %v220, 0
        %v250 = vsel %vm239, %v221, 0
        %vm252 = vcmask 1045504
        %v254 = vsel %vm252, %v237, 0
        %256 = vmatpush.bf16.msra.mxu0 0
        %257 = vmatpush.bf16.msra.mxu0 0
        %258 = vmatpush.bf16.msra.mxu0 0
        %259 = vmatpush.bf16.msra.mxu0 0
        %260 = vmatpush.bf16.msra.mxu0 0
        %261 = vmatpush.bf16.msra.mxu0 0
        %262 = vmatpush.bf16.msra.mxu0 %v254
        %263 = vmatpush.bf16.msra.mxu0 %v236
        %264 = vmatmul.bf16.gmra.mxu0 %v241
        %v265 = vpop.f32.mrf.mxu0
        %v266 = vadd.f32 0.0, %v265
        %v267 = vpop.f32.mrf.mxu0
        %v268 = vadd.f32 0.0, %v267
        %269 = vmatmul.bf16.gmra.mxu0 %v244
        %v270 = vpop.f32.mrf.mxu0
        %v271 = vadd.f32 0.0, %v270
        %v272 = vpop.f32.mrf.mxu0
        %v273 = vadd.f32 0.0, %v272
        %274 = vmatmul.bf16.gmra.mxu0 %v247
        %v275 = vpop.f32.mrf.mxu0
        %v276 = vadd.f32 0.0, %v275
        %v277 = vpop.f32.mrf.mxu0
        %v278 = vadd.f32 0.0, %v277
        %279 = vmatmul.bf16.gmra.mxu0 %v250
        %v280 = vpop.f32.mrf.mxu0
        %v281 = vadd.f32 0.0, %v280
        %v282 = vpop.f32.mrf.mxu0
        %v283 = vadd.f32 0.0, %v282
        %284 = vdwg.mxu0
        %v285 = vpack.c.bf16 %v266, %v266
        %v286 = vpack.c.bf16 %v268, %v268
        %v287 = vpack.c.bf16 %v271, %v271
        %v288 = vpack.c.bf16 %v273, %v273
        %v289 = vpack.c.bf16 %v276, %v276
        %v290 = vpack.c.bf16 %v278, %v278
        %v291 = vpack.c.bf16 %v281, %v281
        %v292 = vpack.c.bf16 %v283, %v283
        %v295 = vunpack.c.l.b16 %v222
        %v296 = vunpack.c.l.b16 %v223
        %v297 = vpack.c.b16 %v296, %v295
        %v301 = vunpack.c.l.b16 %v285
        %v302 = vunpack.c.l.b16 %v286
        %v303 = vunpack.c.l.b16 %v287
        %v304 = vpack.c.b16 %v302, %v301
        %v305 = vpack.c.b16 %v303, %v303
        %vm307 = vcmask 162816
        %v309 = vsel %vm307, %v297, 0
        %vm311 = vcmask 1041408
        %v313 = vsel %vm311, %v305, 0
        %315 = vmatpush.bf16.msra.mxu0 0
        %316 = vmatpush.bf16.msra.mxu0 0
        %317 = vmatpush.bf16.msra.mxu0 0
        %318 = vmatpush.bf16.msra.mxu0 0
        %319 = vmatpush.bf16.msra.mxu0 0
        %320 = vmatpush.bf16.msra.mxu0 0
        %321 = vmatpush.bf16.msra.mxu0 %v313
        %322 = vmatpush.bf16.msra.mxu0 %v304
        %323 = vmatmul.bf16.gmra.mxu0 %v309
        %v324 = vpop.f32.mrf.mxu0
        %v325 = vadd.f32 0.0, %v324
        %v326 = vpop.f32.mrf.mxu0
        %v327 = vadd.f32 0.0, %v326
        %328 = vdwg.mxu0
        %s329 = smul.u32 %s32, 3
        %s330 = sld [smem:[#allocation3 + %s329]]
        %v331 = vstv %s330
        %v332 = vmul.f32 %v325, %v331
        %v333 = vmul.f32 %v327, %v331
        %s334 = sld [smem:[#allocation4 + %s329]]
        %v335 = vstv %s334
        %v336 = vadd.f32 %v332, %v335
        %v337 = vadd.f32 %v333, %v335
        %vm338 = vcmask 130048
        %339 = vst.msk [vmem:[%s178] sm:$0xff] %vm338, %v336
        %340 = vst.msk [vmem:[%s178 + $0x8] sm:$0xff] %vm338, %v337
        %v343 = vunpack.c.l.b16 %v288
        %v344 = vunpack.c.l.b16 %v289
        %v345 = vpack.c.b16 %v343, %v303
        %v346 = vpack.c.b16 %v344, %v344
        %vm347 = vcmask 1045504
        %v348 = vrot.slane %v345, 2
        %v349 = vrot.slane %v346, 2
        %v350 = vsel %vm347, %v348, %v349
        %v353 = vsel %vm311, %v349, 0
        %355 = vmatpush.bf16.msra.mxu0 0
        %356 = vmatpush.bf16.msra.mxu0 0
        %357 = vmatpush.bf16.msra.mxu0 0
        %358 = vmatpush.bf16.msra.mxu0 0
        %359 = vmatpush.bf16.msra.mxu0 0
        %360 = vmatpush.bf16.msra.mxu0 0
        %361 = vmatpush.bf16.msra.mxu0 %v353
        %362 = vmatpush.bf16.msra.mxu0 %v350
        %363 = vmatmul.bf16.gmra.mxu0 %v309
        %v364 = vpop.f32.mrf.mxu0
        %v365 = vadd.f32 0.0, %v364
        %v366 = vpop.f32.mrf.mxu0
        %v367 = vadd.f32 0.0, %v366
        %368 = vdwg.mxu0
        %s369 = sadd.s32 %s329, 1
        %s370 = sld [smem:[#allocation3 + %s369]]
        %v371 = vstv %s370
        %v372 = vmul.f32 %v365, %v371
        %v373 = vmul.f32 %v367, %v371
        %s374 = sld [smem:[#allocation4 + %s369]]
        %v375 = vstv %s374
        %v376 = vadd.f32 %v372, %v375
        %v377 = vadd.f32 %v373, %v375
        %s378 = scalar_lea.vmem %s178, 16 [#allocation5]
        %379 = vst.msk [vmem:[%s378] sm:$0xff] %vm338, %v376
        %380 = vst.msk [vmem:[%s378 + $0x8] sm:$0xff] %vm338, %v377
        %v384 = vunpack.c.l.b16 %v290
        %v385 = vunpack.c.l.b16 %v291
        %v386 = vunpack.c.l.b16 %v292
        %v387 = vpack.c.b16 %v385, %v384
        %v388 = vpack.c.b16 %v386, %v386
        %v391 = vsel %vm311, %v388, 0
        %393 = vmatpush.bf16.msra.mxu0 0
        %394 = vmatpush.bf16.msra.mxu0 0
        %395 = vmatpush.bf16.msra.mxu0 0
        %396 = vmatpush.bf16.msra.mxu0 0
        %397 = vmatpush.bf16.msra.mxu0 0
        %398 = vmatpush.bf16.msra.mxu0 0
        %399 = vmatpush.bf16.msra.mxu0 %v391
        %400 = vmatpush.bf16.msra.mxu0 %v387
        %401 = vmatmul.bf16.gmra.mxu0 %v309
        %v402 = vpop.f32.mrf.mxu0
        %v403 = vadd.f32 0.0, %v402
        %v404 = vpop.f32.mrf.mxu0
        %v405 = vadd.f32 0.0, %v404
        %406 = vdwg.mxu0
        %s407 = sadd.s32 %s329, 2
        %s408 = sld [smem:[#allocation3 + %s407]]
        %v409 = vstv %s408
        %v410 = vmul.f32 %v403, %v409
        %v411 = vmul.f32 %v405, %v409
        %s412 = sld [smem:[#allocation4 + %s407]]
        %v413 = vstv %s412
        %v414 = vadd.f32 %v410, %v413
        %v415 = vadd.f32 %v411, %v413
        %s416 = scalar_lea.vmem %s178, 32 [#allocation5]
        %417 = vst.msk [vmem:[%s416] sm:$0xff] %vm338, %v414
        %418 = vst.msk [vmem:[%s416 + $0x8] sm:$0xff] %vm338, %v415
        %s419 = sand.u32 %s108, 1
        %s420 = scalar_lea.sflag [#allocation6], %s419
        %s421 = sand.u32 %s108, 1
        %s422 = smul.addr %s421, 48
        %s423 = scalar_lea.vmem [#allocation5], %s422
        // Predicated region
        $region33: #{tpu_custom_call.1} parent=31 // pred_check
          %p424 = pneg %p118
        $region34: #{tpu_custom_call.1} parent=31 // pred_check_branch
          %426 = sbr.rel (%p424) target = $region36
        $region35: #{tpu_custom_call.1} parent=31 // pred_region
          %s427 = smul.u32 3, %s32
          %429 = vsyncadd %s420, 0
          %s430 = smul.addr %s427, 2
          %s431 = smul.addr %s430, 8
          %s432 = scalar_lea.hbm %s5, %s431
          %s433 = sshll.u32 %s423, 4
          %s434 = int_to_ptr.vmem [resolvable:$true] %s433
          %s435 = sshll.u32 %s432, 4
          %s436 = int_to_ptr.hbm [resolvable:$true] %s435
          %441 = dma.vmem_to_hbm [thread:$0]  %s434, 768, %s436, %s420, 128, 128, 8
        $region36: #{tpu_custom_call.1} parent=31 // pred_fallthru
          _
      $region32: #{tpu_custom_call.1} parent=5 // pred_fallthru
        _
      %p442 = scmp.le.s32.totalorder 2, %s27
      // Predicated region
      $region37: #{tpu_custom_call.1} parent=5 // pred_check
        %p443 = pneg %p442
      $region38: #{tpu_custom_call.1} parent=5 // pred_check_branch
        %445 = sbr.rel (%p443) target = $region40
      $region39: #{tpu_custom_call.1} parent=5 // pred_region
        %s446 = ssub.s32 %s27, 2
        // Predicated region
        $region41: #{tpu_custom_call.1} parent=39 // pred_check
          %p447 = pneg %p124
        $region42: #{tpu_custom_call.1} parent=39 // pred_check_branch
          %449 = sbr.rel (%p447) target = $region44
        $region43: #{tpu_custom_call.1} parent=39 // pred_region
          %s450 = sand.u32 %s109, 1
          %s451 = scalar_lea.sflag [#allocation6], %s450
          %s452 = sand.u32 %s109, 1
          %s453 = smul.addr %s452, 48
          %s454 = scalar_lea.vmem [#allocation5], %s453
          %456 = dma.done %s451, 768
        $region44: #{tpu_custom_call.1} parent=39 // pred_fallthru
          _
      $region40: #{tpu_custom_call.1} parent=5 // pred_fallthru
        _
    $region6: #{tpu_custom_call.1} parent=1 // loop_footer
      %s31 = sadd.s32 1, %s27
    $region7: #{tpu_custom_call.1} parent=1 // loop_footer_branch
      %26 = sbr.rel target = $region3
    $region8: #{tpu_custom_call.1} parent=1 // loop_exit
      _
    %457 = vsyncpa [#allocation6], 1
    %s458 = scalar_lea.sflag [#allocation6], 1
    %459 = vsyncpa %s458, 1

</llo_original>
